<compile_context>
chip_gen: v7x
topology: tpu7x:2x2x1
jax: 0.10.0
libtpu: 0.0.40
codegen_flags: <defaults>
</compile_context>

<pallas_src>
import jax
import jax.numpy as jnp
from jax.experimental import pallas as pl
from jax.experimental.pallas import tpu as pltpu


SLAB = 128  # lane-dense output width: [h_new (H) | q (n_actions) | padding]


def rnn_agent_kernel(
    x_ref, h_ref,          # activations: (Bp, F), (Bp, H)
    w1_ref, b1_ref,        # fc1: (F, H), (1, H)
    wi_ref, bi_ref,        # GRU input->hidden  [r|z|n]: (H, 3H), (1, 3H)
    wh_ref, bh_ref,        # GRU hidden->hidden [r|z|n]: (H, 3H), (1, 3H)
    wo_ref, bo_ref,        # fused output [I_H | W2 | 0]: (H, SLAB), (1, SLAB)
    out_ref,               # (Bp, SLAB): lanes [0:H)=h_new, [H:H+A)=q
):
    H = h_ref.shape[-1]
    x = x_ref[...]
    h = h_ref[...]

    # fc1 + ReLU
    x1 = jnp.dot(x, w1_ref[...], preferred_element_type=jnp.float32) + b1_ref[...]
    x1 = jnp.maximum(x1, 0.0)

    # GRUCell (PyTorch gate order r, z, n), six matmuls fused into two wide
    # (H, 3H) dots. Host-side bias packing:
    #   bi = [b_ir + b_hr | b_iz + b_hz | b_in],   bh = [0 | 0 | b_hn]
    gi = jnp.dot(x1, wi_ref[...], preferred_element_type=jnp.float32) + bi_ref[...]
    gh = jnp.dot(h, wh_ref[...], preferred_element_type=jnp.float32) + bh_ref[...]

    r = jax.nn.sigmoid(gi[:, 0 * H:1 * H] + gh[:, 0 * H:1 * H])
    z = jax.nn.sigmoid(gi[:, 1 * H:2 * H] + gh[:, 1 * H:2 * H])
    n = jnp.tanh(gi[:, 2 * H:3 * H] + r * gh[:, 2 * H:3 * H])
    h_new = (1.0 - z) * n + z * h

    # fc2 fused with hidden-state passthrough: wo = [I_H | W2 | 0] so a single
    # (Bp,H)@(H,128) dot yields a lane-dense slab [h_new | q | 0]; one
    # unmasked full-width store, one output DMA.
    out_ref[...] = (
        jnp.dot(h_new, wo_ref[...], preferred_element_type=jnp.float32) + bo_ref[...]
    )


def pack_params(p):
    """Build the fused / consolidated operand set the kernel consumes."""
    H = p["w_hr"].shape[0]
    n_actions = p["w2"].shape[1]
    zeros_b = jnp.zeros((1, H), jnp.float32)

    wi = jnp.concatenate([p["w_ir"], p["w_iz"], p["w_in"]], axis=1)          # (H, 3H)
    wh = jnp.concatenate([p["w_hr"], p["w_hz"], p["w_hn"]], axis=1)          # (H, 3H)
    bi = jnp.concatenate(
        [p["b_ir"] + p["b_hr"], p["b_iz"] + p["b_hz"], p["b_in"]], axis=1)   # (1, 3H)
    bh = jnp.concatenate([zeros_b, zeros_b, p["b_hn"]], axis=1)              # (1, 3H)

    pad = SLAB - H - n_actions
    wo = jnp.concatenate(
        [jnp.eye(H, dtype=jnp.float32), p["w2"],
         jnp.zeros((H, pad), jnp.float32)], axis=1)                          # (H, 128)
    bo = jnp.concatenate(
        [jnp.zeros((1, H), jnp.float32), p["b2"],
         jnp.zeros((1, pad), jnp.float32)], axis=1)                          # (1, 128)

    return {"w1": p["w1"], "b1": p["b1"], "wi": wi, "bi": bi,
            "wh": wh, "bh": bh, "wo": wo, "bo": bo}


def rnn_agent_forward(inputs, hidden_state, packed, *, hidden_dim, n_actions):
    """inputs: (B, input_shape) f32, hidden_state: (..., H) f32.
    Returns (q: (B, n_actions), h: (B, H))."""
    H = hidden_dim
    h_in = hidden_state.reshape(-1, H)
    B = inputs.shape[0]
    Bp = ((B + 7) // 8) * 8  # pad batch to full 8-sublane tiles

    if Bp != B:
        x = jnp.pad(inputs, ((0, Bp - B), (0, 0)))
        h = jnp.pad(h_in, ((0, Bp - B), (0, 0)))
    else:
        x, h = inputs, h_in

    args = (x, h,
            packed["w1"], packed["b1"],
            packed["wi"], packed["bi"],
            packed["wh"], packed["bh"],
            packed["wo"], packed["bo"])

    vmem = pl.BlockSpec(memory_space=pltpu.MemorySpace.VMEM)
    slab = pl.pallas_call(
        rnn_agent_kernel,
        out_shape=jax.ShapeDtypeStruct((Bp, SLAB), jnp.float32),
        in_specs=[vmem] * len(args),
        out_specs=vmem,
    )(*args)

    h_out = slab[:B, :H]
    q = slab[:B, H:H + n_actions]
    return q, h_out


def init_params(key, input_shape, hidden_dim, n_actions):
    """Deterministic init matching the shapes of nn.Linear / nn.GRUCell params.
    All weight matrices are stored already transposed to (in, out)."""
    ks = jax.random.split(key, 18)

    def uni(k, shape, fan_in):
        bound = 1.0 / jnp.sqrt(jnp.float32(fan_in))
        return jax.random.uniform(k, shape, jnp.float32, -bound, bound)

    H = hidden_dim
    return {
        # fc1: Linear(input_shape, H)
        "w1": uni(ks[0], (input_shape, H), input_shape),
        "b1": uni(ks[1], (1, H), input_shape),
        # GRUCell(H, H): weight_ih / weight_hh split into r/z/n, stored (in,out)
        "w_ir": uni(ks[2], (H, H), H), "b_ir": uni(ks[3], (1, H), H),
        "w_iz": uni(ks[4], (H, H), H), "b_iz": uni(ks[5], (1, H), H),
        "w_in": uni(ks[6], (H, H), H), "b_in": uni(ks[7], (1, H), H),
        "w_hr": uni(ks[8], (H, H), H), "b_hr": uni(ks[9], (1, H), H),
        "w_hz": uni(ks[10], (H, H), H), "b_hz": uni(ks[11], (1, H), H),
        "w_hn": uni(ks[12], (H, H), H), "b_hn": uni(ks[13], (1, H), H),
        # fc2: Linear(H, n_actions)
        "w2": uni(ks[14], (H, n_actions), H),
        "b2": uni(ks[15], (1, n_actions), H),
    }


def reference_forward(inputs, hidden_state, p):
    """Pure-JAX reference of the PyTorch forward."""
    H = p["w_hr"].shape[0]
    h_in = hidden_state.reshape(-1, H)
    x1 = jax.nn.relu(inputs @ p["w1"] + p["b1"])
    r = jax.nn.sigmoid(x1 @ p["w_ir"] + p["b_ir"] + h_in @ p["w_hr"] + p["b_hr"])
    z = jax.nn.sigmoid(x1 @ p["w_iz"] + p["b_iz"] + h_in @ p["w_hz"] + p["b_hz"])
    n = jnp.tanh(x1 @ p["w_in"] + p["b_in"] + r * (h_in @ p["w_hn"] + p["b_hn"]))
    h = (1.0 - z) * n + z * h_in
    q = h @ p["w2"] + p["b2"]
    return q, h


if __name__ == "__main__":
    # Small shapes consistent with the module: batch (n_agents*bs) = 6,
    # input_shape = 40, rnn_hidden_dim = 32, n_actions = 12.
    B, INPUT_SHAPE, HIDDEN, N_ACTIONS = 6, 40, 32, 12

    key = jax.random.PRNGKey(0)
    k_inp, k_hid, k_par = jax.random.split(key, 3)

    inputs = jax.random.normal(k_inp, (B, INPUT_SHAPE), jnp.float32)
    # init_hidden() returns zeros; perturb slightly to make the check non-trivial.
    hidden_state = 0.1 * jax.random.normal(k_hid, (B, HIDDEN), jnp.float32)

    params = init_params(k_par, INPUT_SHAPE, HIDDEN, N_ACTIONS)
    packed = pack_params(params)

    q, h = rnn_agent_forward(inputs, hidden_state, packed,
                             hidden_dim=HIDDEN, n_actions=N_ACTIONS)
    q = jax.block_until_ready(q)
    h = jax.block_until_ready(h)

    q_ref, h_ref = reference_forward(inputs, hidden_state, params)
    assert q.shape == (B, N_ACTIONS) and h.shape == (B, HIDDEN)
    assert jnp.allclose(q, q_ref, atol=1e-4, rtol=1e-4)
    assert jnp.allclose(h, h_ref, atol=1e-4, rtol=1e-4)

    print("KERNEL_OK")
</pallas_src>

<mosaic_0001>
module attributes {stable_mosaic.version = 11 : i64} {
  func.func @rnn_agent_kernel(%arg0: memref<8x40xf32, #tpu.memory_space<vmem>>, %arg1: memref<8x32xf32, #tpu.memory_space<vmem>>, %arg2: memref<40x32xf32, #tpu.memory_space<vmem>>, %arg3: memref<1x32xf32, #tpu.memory_space<vmem>>, %arg4: memref<32x96xf32, #tpu.memory_space<vmem>>, %arg5: memref<1x96xf32, #tpu.memory_space<vmem>>, %arg6: memref<32x96xf32, #tpu.memory_space<vmem>>, %arg7: memref<1x96xf32, #tpu.memory_space<vmem>>, %arg8: memref<32x128xf32, #tpu.memory_space<vmem>>, %arg9: memref<1x128xf32, #tpu.memory_space<vmem>>, %arg10: memref<8x128xf32, #tpu.memory_space<vmem>>) attributes {dimension_semantics = [], scalar_prefetch = 0 : i64, scratch_operands = 0 : i64, tpu.core_type = #tpu.core_type<tc>} {
    %c0 = arith.constant 0 : index
    %c0_0 = arith.constant 0 : index
    %0 = vector.load %arg0[%c0, %c0_0] : memref<8x40xf32, #tpu.memory_space<vmem>>, vector<8x40xf32>
    %c0_1 = arith.constant 0 : index
    %c0_2 = arith.constant 0 : index
    %1 = vector.load %arg1[%c0_1, %c0_2] : memref<8x32xf32, #tpu.memory_space<vmem>>, vector<8x32xf32>
    %c0_3 = arith.constant 0 : index
    %c0_4 = arith.constant 0 : index
    %2 = vector.load %arg2[%c0_3, %c0_4] : memref<40x32xf32, #tpu.memory_space<vmem>>, vector<40x32xf32>
    %cst = arith.constant dense<0.000000e+00> : vector<8x32xf32>
    %3 = tpu.matmul %0, %2, %cst {dimension_numbers = #tpu.dot_dimension_numbers<[1], [0], [0], [1], [0, 0, 1, 1], [], []>} : vector<8x40xf32>, vector<40x32xf32>, vector<8x32xf32> -> vector<8x32xf32>
    %c0_5 = arith.constant 0 : index
    %c0_6 = arith.constant 0 : index
    %4 = vector.load %arg3[%c0_5, %c0_6] : memref<1x32xf32, #tpu.memory_space<vmem>>, vector<1x32xf32>
    %5 = vector.broadcast %4 : vector<1x32xf32> to vector<8x32xf32>
    %6 = arith.addf %3, %5 : vector<8x32xf32>
    %cst_7 = arith.constant 0.000000e+00 : f32
    %7 = vector.broadcast %cst_7 : f32 to vector<8x32xf32>
    %8 = arith.maximumf %6, %7 : vector<8x32xf32>
    %c0_8 = arith.constant 0 : index
    %c0_9 = arith.constant 0 : index
    %9 = vector.load %arg4[%c0_8, %c0_9] : memref<32x96xf32, #tpu.memory_space<vmem>>, vector<32x96xf32>
    %cst_10 = arith.constant dense<0.000000e+00> : vector<8x96xf32>
    %10 = tpu.matmul %8, %9, %cst_10 {dimension_numbers = #tpu.dot_dimension_numbers<[1], [0], [0], [1], [0, 0, 1, 1], [], []>} : vector<8x32xf32>, vector<32x96xf32>, vector<8x96xf32> -> vector<8x96xf32>
    %c0_11 = arith.constant 0 : index
    %c0_12 = arith.constant 0 : index
    %11 = vector.load %arg5[%c0_11, %c0_12] : memref<1x96xf32, #tpu.memory_space<vmem>>, vector<1x96xf32>
    %12 = vector.broadcast %11 : vector<1x96xf32> to vector<8x96xf32>
    %13 = arith.addf %10, %12 : vector<8x96xf32>
    %c0_13 = arith.constant 0 : index
    %c0_14 = arith.constant 0 : index
    %14 = vector.load %arg6[%c0_13, %c0_14] : memref<32x96xf32, #tpu.memory_space<vmem>>, vector<32x96xf32>
    %cst_15 = arith.constant dense<0.000000e+00> : vector<8x96xf32>
    %15 = tpu.matmul %1, %14, %cst_15 {dimension_numbers = #tpu.dot_dimension_numbers<[1], [0], [0], [1], [0, 0, 1, 1], [], []>} : vector<8x32xf32>, vector<32x96xf32>, vector<8x96xf32> -> vector<8x96xf32>
    %c0_16 = arith.constant 0 : index
    %c0_17 = arith.constant 0 : index
    %16 = vector.load %arg7[%c0_16, %c0_17] : memref<1x96xf32, #tpu.memory_space<vmem>>, vector<1x96xf32>
    %17 = vector.broadcast %16 : vector<1x96xf32> to vector<8x96xf32>
    %18 = arith.addf %15, %17 : vector<8x96xf32>
    %19 = vector.extract_strided_slice %13 {offsets = [0, 0], sizes = [8, 32], strides = [1, 1]} : vector<8x96xf32> to vector<8x32xf32>
    %20 = vector.extract_strided_slice %18 {offsets = [0, 0], sizes = [8, 32], strides = [1, 1]} : vector<8x96xf32> to vector<8x32xf32>
    %21 = arith.addf %19, %20 : vector<8x32xf32>
    %22 = arith.negf %21 : vector<8x32xf32>
    %23 = math.exp %22 : vector<8x32xf32>
    %cst_18 = arith.constant 1.000000e+00 : f32
    %24 = vector.broadcast %cst_18 : f32 to vector<8x32xf32>
    %25 = arith.addf %24, %23 : vector<8x32xf32>
    %26 = arith.divf %24, %25 : vector<8x32xf32>
    %27 = vector.extract_strided_slice %13 {offsets = [0, 32], sizes = [8, 32], strides = [1, 1]} : vector<8x96xf32> to vector<8x32xf32>
    %28 = vector.extract_strided_slice %18 {offsets = [0, 32], sizes = [8, 32], strides = [1, 1]} : vector<8x96xf32> to vector<8x32xf32>
    %29 = arith.addf %27, %28 : vector<8x32xf32>
    %30 = arith.negf %29 : vector<8x32xf32>
    %31 = math.exp %30 : vector<8x32xf32>
    %cst_19 = arith.constant 1.000000e+00 : f32
    %32 = vector.broadcast %cst_19 : f32 to vector<8x32xf32>
    %33 = arith.addf %32, %31 : vector<8x32xf32>
    %34 = arith.divf %32, %33 : vector<8x32xf32>
    %35 = vector.extract_strided_slice %13 {offsets = [0, 64], sizes = [8, 32], strides = [1, 1]} : vector<8x96xf32> to vector<8x32xf32>
    %36 = vector.extract_strided_slice %18 {offsets = [0, 64], sizes = [8, 32], strides = [1, 1]} : vector<8x96xf32> to vector<8x32xf32>
    %37 = arith.mulf %26, %36 : vector<8x32xf32>
    %38 = arith.addf %35, %37 : vector<8x32xf32>
    %39 = math.tanh %38 : vector<8x32xf32>
    %cst_20 = arith.constant 1.000000e+00 : f32
    %40 = vector.broadcast %cst_20 : f32 to vector<8x32xf32>
    %41 = arith.subf %40, %34 : vector<8x32xf32>
    %42 = arith.mulf %41, %39 : vector<8x32xf32>
    %43 = arith.mulf %34, %1 : vector<8x32xf32>
    %44 = arith.addf %42, %43 : vector<8x32xf32>
    %c0_21 = arith.constant 0 : index
    %c0_22 = arith.constant 0 : index
    %45 = vector.load %arg8[%c0_21, %c0_22] : memref<32x128xf32, #tpu.memory_space<vmem>>, vector<32x128xf32>
    %cst_23 = arith.constant dense<0.000000e+00> : vector<8x128xf32>
    %46 = tpu.matmul %44, %45, %cst_23 {dimension_numbers = #tpu.dot_dimension_numbers<[1], [0], [0], [1], [0, 0, 1, 1], [], []>} : vector<8x32xf32>, vector<32x128xf32>, vector<8x128xf32> -> vector<8x128xf32>
    %c0_24 = arith.constant 0 : index
    %c0_25 = arith.constant 0 : index
    %47 = vector.load %arg9[%c0_24, %c0_25] : memref<1x128xf32, #tpu.memory_space<vmem>>, vector<1x128xf32>
    %48 = vector.broadcast %47 : vector<1x128xf32> to vector<8x128xf32>
    %49 = arith.addf %46, %48 : vector<8x128xf32>
    %c0_26 = arith.constant 0 : index
    %c0_27 = arith.constant 0 : index
    %50 = vector.load %arg10[%c0_26, %c0_27] : memref<8x128xf32, #tpu.memory_space<vmem>>, vector<8x128xf32>
    tpu.vector_store %arg10[%c0_26, %c0_27], %49 {strides = array<i32>} : memref<8x128xf32, #tpu.memory_space<vmem>>, vector<8x128xf32>,
    return
  }
}

</mosaic_0001>

<llo_original>
// kernel: tpu_custom_call.1
$region0: #{tpu_custom_call.1}
  #allocation0 [shape = 'u32[]', space=smem, size = 0x4, offset = 0x4, fixed_abs, tag = 'smem constant byte address 0x4 - core index']
  #allocation1 [shape = 'u32[144,128]{1,0:T(1,128)}', space=vmem, size = 0x12000, scoped, tag = 'internal scratch']
  %s0 = inlined_call_operand.hbm [shape: f32[8,40], index: 0, kind: input, shape index: {}]
  %s1 = inlined_call_operand.hbm [shape: f32[8,32], index: 1, kind: input, shape index: {}]
  %s2 = inlined_call_operand.vmem [shape: f32[40,32], index: 2, kind: input, shape index: {}]
  %s3 = inlined_call_operand.vmem [shape: f32[1,32], index: 3, kind: input, shape index: {}]
  %s4 = inlined_call_operand.vmem [shape: f32[32,96], index: 4, kind: input, shape index: {}]
  %s5 = inlined_call_operand.vmem [shape: f32[1,96], index: 5, kind: input, shape index: {}]
  %s6 = inlined_call_operand.vmem [shape: f32[32,96], index: 6, kind: input, shape index: {}]
  %s7 = inlined_call_operand.hbm [shape: f32[1,96], index: 7, kind: input, shape index: {}]
  %s8 = inlined_call_operand.vmem [shape: f32[32,128], index: 8, kind: input, shape index: {}]
  %s9 = inlined_call_operand.vmem [shape: f32[1,128], index: 9, kind: input, shape index: {}]
  %s10 = inlined_call_operand.hbm [shape: f32[8,128], index: 10, kind: output, shape index: {}]
  %s11 = sld [smem:[#allocation0]]
  $region62: #{tpu_custom_call.1} parent=0
    _
  %s13 = ssub.s32 1, %s11
  %s14 = scalar_select 0, %s13, %s11
  $region1: #{tpu_custom_call.1} parent=0
    #allocation2 [shape = 'u8[4096]{0}', space=vmem, size = 0x1000, scoped, tag = 'input window, operand 0, single buffered']
    #allocation3 [shape = 's32[1]{0}', space=sflag, size = 0x4, scoped, tag = 'scoped memory for tpu_custom_call.1']
    #allocation4 [shape = 's32[1]{0}', space=sflag, size = 0x4, scoped, tag = 'scoped memory for tpu_custom_call.1']
    #allocation5 [shape = 'u8[4096]{0}', space=vmem, size = 0x1000, scoped, tag = 'input window, operand 1, single buffered']
    #allocation6 [shape = 's32[1]{0}', space=sflag, size = 0x4, scoped, tag = 'scoped memory for tpu_custom_call.1']
    #allocation7 [shape = 'u8[512]{0}', space=vmem, size = 0x400, scoped, tag = 'input window, operand 7, single buffered']
    #allocation8 [shape = 'u8[4096]{0}', space=vmem, size = 0x1000, scoped, tag = 'output window, operand 0, single buffered']
    %15 = vsyncpa [#allocation3], 0
    %16 = vsyncpa [#allocation6], 0
    %17 = vsyncpa [#allocation4], 0
    // Predicated region
    $region2: #{tpu_custom_call.1} parent=1 // pred_check
      _
    $region3: #{tpu_custom_call.1} parent=1 // pred_check_branch
      %19 = sbr.rel (0) target = $region5
    $region4: #{tpu_custom_call.1} parent=1 // pred_region
      %s21 = ssub.s32 128, 128
      %22 = vsyncadd [#allocation3], %s21
      %s24 = sshll.u32 [#allocation2], 4
      %s25 = int_to_ptr.vmem [resolvable:$true] %s24
      %27 = dma.hbm_to_vmem [thread:$0]  %s0, 128, %s25, [#allocation3]
    $region5: #{tpu_custom_call.1} parent=1 // pred_fallthru
      _
    // Predicated region
    $region6: #{tpu_custom_call.1} parent=1 // pred_check
      _
    $region7: #{tpu_custom_call.1} parent=1 // pred_check_branch
      %29 = sbr.rel (0) target = $region9
    $region8: #{tpu_custom_call.1} parent=1 // pred_region
      %s31 = ssub.s32 128, 128
      %32 = vsyncadd [#allocation6], %s31
      %s34 = sshll.u32 [#allocation5], 4
      %s35 = int_to_ptr.vmem [resolvable:$true] %s34
      %37 = dma.hbm_to_vmem [thread:$0]  %s1, 128, %s35, [#allocation6]
    $region9: #{tpu_custom_call.1} parent=1 // pred_fallthru
      _
    // Predicated region
    $region10: #{tpu_custom_call.1} parent=1 // pred_check
      _
    $region11: #{tpu_custom_call.1} parent=1 // pred_check_branch
      %39 = sbr.rel (0) target = $region13
    $region12: #{tpu_custom_call.1} parent=1 // pred_region
      _
    $region13: #{tpu_custom_call.1} parent=1 // pred_fallthru
      _
    // Predicated region
    $region14: #{tpu_custom_call.1} parent=1 // pred_check
      _
    $region15: #{tpu_custom_call.1} parent=1 // pred_check_branch
      %41 = sbr.rel (0) target = $region17
    $region16: #{tpu_custom_call.1} parent=1 // pred_region
      _
    $region17: #{tpu_custom_call.1} parent=1 // pred_fallthru
      _
    // Predicated region
    $region18: #{tpu_custom_call.1} parent=1 // pred_check
      _
    $region19: #{tpu_custom_call.1} parent=1 // pred_check_branch
      %43 = sbr.rel (0) target = $region21
    $region20: #{tpu_custom_call.1} parent=1 // pred_region
      _
    $region21: #{tpu_custom_call.1} parent=1 // pred_fallthru
      _
    // Predicated region
    $region22: #{tpu_custom_call.1} parent=1 // pred_check
      _
    $region23: #{tpu_custom_call.1} parent=1 // pred_check_branch
      %45 = sbr.rel (0) target = $region25
    $region24: #{tpu_custom_call.1} parent=1 // pred_region
      _
    $region25: #{tpu_custom_call.1} parent=1 // pred_fallthru
      _
    // Predicated region
    $region26: #{tpu_custom_call.1} parent=1 // pred_check
      _
    $region27: #{tpu_custom_call.1} parent=1 // pred_check_branch
      %47 = sbr.rel (0) target = $region29
    $region28: #{tpu_custom_call.1} parent=1 // pred_region
      _
    $region29: #{tpu_custom_call.1} parent=1 // pred_fallthru
      _
    // Predicated region
    $region30: #{tpu_custom_call.1} parent=1 // pred_check
      _
    $region31: #{tpu_custom_call.1} parent=1 // pred_check_branch
      %49 = sbr.rel (0) target = $region33
    $region32: #{tpu_custom_call.1} parent=1 // pred_region
      %s51 = ssub.s32 16, 16
      %52 = vsyncadd [#allocation6], %s51
      %s54 = sshll.u32 [#allocation7], 4
      %s55 = int_to_ptr.vmem [resolvable:$true] %s54
      %57 = dma.hbm_to_vmem [thread:$0]  %s7, 16, %s55, [#allocation6]
    $region33: #{tpu_custom_call.1} parent=1 // pred_fallthru
      _
    // Predicated region
    $region34: #{tpu_custom_call.1} parent=1 // pred_check
      _
    $region35: #{tpu_custom_call.1} parent=1 // pred_check_branch
      %59 = sbr.rel (0) target = $region37
    $region36: #{tpu_custom_call.1} parent=1 // pred_region
      _
    $region37: #{tpu_custom_call.1} parent=1 // pred_fallthru
      _
    // Predicated region
    $region38: #{tpu_custom_call.1} parent=1 // pred_check
      _
    $region39: #{tpu_custom_call.1} parent=1 // pred_check_branch
      %61 = sbr.rel (0) target = $region41
    $region40: #{tpu_custom_call.1} parent=1 // pred_region
      _
    $region41: #{tpu_custom_call.1} parent=1 // pred_fallthru
      _
    // Predicated region
    $region42: #{tpu_custom_call.1} parent=1 // pred_check
      _
    $region43: #{tpu_custom_call.1} parent=1 // pred_check_branch
      %63 = sbr.rel (0) target = $region45
    $region44: #{tpu_custom_call.1} parent=1 // pred_region
      %64 = dma.done [#allocation3], 128
    $region45: #{tpu_custom_call.1} parent=1 // pred_fallthru
      _
    // Predicated region
    $region46: #{tpu_custom_call.1} parent=1 // pred_check
      _
    $region47: #{tpu_custom_call.1} parent=1 // pred_check_branch
      %66 = sbr.rel (0) target = $region49
    $region48: #{tpu_custom_call.1} parent=1 // pred_region
      %67 = dma.done [#allocation6], 128
    $region49: #{tpu_custom_call.1} parent=1 // pred_fallthru
      _
    // Predicated region
    $region50: #{tpu_custom_call.1} parent=1 // pred_check
      _
    $region51: #{tpu_custom_call.1} parent=1 // pred_check_branch
      %69 = sbr.rel (0) target = $region53
    $region52: #{tpu_custom_call.1} parent=1 // pred_region
      %70 = dma.done [#allocation6], 16
    $region53: #{tpu_custom_call.1} parent=1 // pred_fallthru
      _
    %v71 = vld [vmem:[#allocation2] sm:$0xff]
    %v72 = vld [vmem:[#allocation5] sm:$0xff]
    %v73 = vld [vmem:[%s2] sm:$0xff]
    %v74 = vld [vmem:[%s2 + $0x8] sm:$0xff]
    %v75 = vld [vmem:[%s2 + $0x10] sm:$0xff]
    %v76 = vld [vmem:[%s2 + $0x18] sm:$0xff]
    %v77 = vld [vmem:[%s2 + $0x20] sm:$0xff]
    %v78 = vld [vmem:[%s3] sm:$0x1]
    %v80 = vlaneseq
    %v81 = vshrl.u32 %v80, 7
    %v82 = vsub.s32 0, %v81
    %v83 = vrot.slane %v78, %v82
    %vm85 = vcmask 326656
    %v87 = vsel %vm85, %v71, 0
    %89 = vmatprep.subr.mxu0 0.0
    %90 = vmatpush1.msra.mxu0 %v73
    %91 = vmatprep.subr.mxu0 0.0
    %92 = vmatpush1.msra.mxu0 %v74
    %93 = vmatprep.subr.mxu0 0.0
    %94 = vmatpush1.msra.mxu0 %v75
    %95 = vmatprep.subr.mxu0 0.0
    %96 = vmatpush1.msra.mxu0 %v76
    %97 = vmatprep.subr.mxu0 0.0
    %98 = vmatpush1.msra.mxu0 %v77
    %99 = vmatprep.subr.mxu0 0.0
    %100 = vmatpush1.msra.mxu0 0.0
    %101 = vmatprep.subr.mxu0 0.0
    %102 = vmatpush1.msra.mxu0 0.0
    %103 = vmatprep.subr.mxu0 0.0
    %104 = vmatpush1.msra.mxu0 0.0
    %105 = vmatprep.subr.mxu0 0.0
    %106 = vmatpush1.msra.mxu0 0.0
    %107 = vmatprep.subr.mxu0 0.0
    %108 = vmatpush1.msra.mxu0 0.0
    %109 = vmatprep.subr.mxu0 0.0
    %110 = vmatpush1.msra.mxu0 0.0
    %111 = vmatprep.subr.mxu0 0.0
    %112 = vmatpush1.msra.mxu0 0.0
    %113 = vmatprep.subr.mxu0 0.0
    %114 = vmatpush1.msra.mxu0 0.0
    %115 = vmatprep.subr.mxu0 0.0
    %116 = vmatpush1.msra.mxu0 0.0
    %117 = vmatprep.subr.mxu0 0.0
    %118 = vmatpush1.msra.mxu0 0.0
    %119 = vmatprep.subr.mxu0 0.0
    %120 = vmatpush1.msra.mxu0 0.0
    %121 = vmatprep.subr.mxu0 0.0
    %122 = vmatpush1.msra.mxu0 0.0
    %123 = vmatprep.subr.mxu0 0.0
    %124 = vmatpush1.msra.mxu0 0.0
    %125 = vmatprep.subr.mxu0 0.0
    %126 = vmatpush1.msra.mxu0 0.0
    %127 = vmatprep.subr.mxu0 0.0
    %128 = vmatpush1.msra.mxu0 0.0
    %129 = vmatprep.subr.mxu0 0.0
    %130 = vmatpush1.msra.mxu0 0.0
    %131 = vmatprep.subr.mxu0 0.0
    %132 = vmatpush1.msra.mxu0 0.0
    %133 = vmatprep.subr.mxu0 0.0
    %134 = vmatpush1.msra.mxu0 0.0
    %135 = vmatprep.subr.mxu0 0.0
    %136 = vmatpush1.msra.mxu0 0.0
    %137 = vmatprep.subr.mxu0 0.0
    %138 = vmatpush1.msra.mxu0 0.0
    %139 = vmatprep.subr.mxu0 0.0
    %140 = vmatpush1.msra.mxu0 0.0
    %141 = vmatprep.subr.mxu0 0.0
    %142 = vmatpush1.msra.mxu0 0.0
    %143 = vmatprep.subr.mxu0 0.0
    %144 = vmatpush1.msra.mxu0 0.0
    %145 = vmatprep.subr.mxu0 0.0
    %146 = vmatpush1.msra.mxu0 0.0
    %147 = vmatprep.subr.mxu0 0.0
    %148 = vmatpush1.msra.mxu0 0.0
    %149 = vmatprep.subr.mxu0 0.0
    %150 = vmatpush1.msra.mxu0 0.0
    %151 = vmatprep.subr.mxu0 0.0
    %152 = vmatpush1.msra.mxu0 0.0
    %153 = vmatprep.mubr.f32.mxu0 0.0
    %154 = vmatmul.mubr.f32.gmra.mrb[0].mxu0 %v87
    %v155 = vpop.f32.mrb[0].mxu0
    %v156 = vadd.f32 %v83, %v155
    %v157 = vpop.f32.mrb[0].mxu0
    %158 = vdwg.mxu0
    %v159 = vmax.f32 %v156, 0.0
    %v160 = vld [vmem:[%s4] sm:$0xff]
    %v161 = vld [vmem:[%s4 + $0x8] sm:$0xff]
    %v162 = vld [vmem:[%s4 + $0x10] sm:$0xff]
    %v163 = vld [vmem:[%s4 + $0x18] sm:$0xff]
    %v164 = vld [vmem:[%s5] sm:$0x1]
    %v166 = vlaneseq
    %v167 = vshrl.u32 %v166, 7
    %v168 = vsub.s32 0, %v167
    %v169 = vrot.slane %v164, %v168
    %vm171 = vcmask 261120
    %v173 = vsel %vm171, %v159, 0
    %175 = vmatprep.subr.mxu0 0.0
    %176 = vmatpush1.msra.mxu0 %v160
    %177 = vmatprep.subr.mxu0 0.0
    %178 = vmatpush1.msra.mxu0 %v161
    %179 = vmatprep.subr.mxu0 0.0
    %180 = vmatpush1.msra.mxu0 %v162
    %181 = vmatprep.subr.mxu0 0.0
    %182 = vmatpush1.msra.mxu0 %v163
    %183 = vmatprep.subr.mxu0 0.0
    %184 = vmatpush1.msra.mxu0 0.0
    %185 = vmatprep.subr.mxu0 0.0
    %186 = vmatpush1.msra.mxu0 0.0
    %187 = vmatprep.subr.mxu0 0.0
    %188 = vmatpush1.msra.mxu0 0.0
    %189 = vmatprep.subr.mxu0 0.0
    %190 = vmatpush1.msra.mxu0 0.0
    %191 = vmatprep.subr.mxu0 0.0
    %192 = vmatpush1.msra.mxu0 0.0
    %193 = vmatprep.subr.mxu0 0.0
    %194 = vmatpush1.msra.mxu0 0.0
    %195 = vmatprep.subr.mxu0 0.0
    %196 = vmatpush1.msra.mxu0 0.0
    %197 = vmatprep.subr.mxu0 0.0
    %198 = vmatpush1.msra.mxu0 0.0
    %199 = vmatprep.subr.mxu0 0.0
    %200 = vmatpush1.msra.mxu0 0.0
    %201 = vmatprep.subr.mxu0 0.0
    %202 = vmatpush1.msra.mxu0 0.0
    %203 = vmatprep.subr.mxu0 0.0
    %204 = vmatpush1.msra.mxu0 0.0
    %205 = vmatprep.subr.mxu0 0.0
    %206 = vmatpush1.msra.mxu0 0.0
    %207 = vmatprep.subr.mxu0 0.0
    %208 = vmatpush1.msra.mxu0 0.0
    %209 = vmatprep.subr.mxu0 0.0
    %210 = vmatpush1.msra.mxu0 0.0
    %211 = vmatprep.subr.mxu0 0.0
    %212 = vmatpush1.msra.mxu0 0.0
    %213 = vmatprep.subr.mxu0 0.0
    %214 = vmatpush1.msra.mxu0 0.0
    %215 = vmatprep.subr.mxu0 0.0
    %216 = vmatpush1.msra.mxu0 0.0
    %217 = vmatprep.subr.mxu0 0.0
    %218 = vmatpush1.msra.mxu0 0.0
    %219 = vmatprep.subr.mxu0 0.0
    %220 = vmatpush1.msra.mxu0 0.0
    %221 = vmatprep.subr.mxu0 0.0
    %222 = vmatpush1.msra.mxu0 0.0
    %223 = vmatprep.subr.mxu0 0.0
    %224 = vmatpush1.msra.mxu0 0.0
    %225 = vmatprep.subr.mxu0 0.0
    %226 = vmatpush1.msra.mxu0 0.0
    %227 = vmatprep.subr.mxu0 0.0
    %228 = vmatpush1.msra.mxu0 0.0
    %229 = vmatprep.subr.mxu0 0.0
    %230 = vmatpush1.msra.mxu0 0.0
    %231 = vmatprep.subr.mxu0 0.0
    %232 = vmatpush1.msra.mxu0 0.0
    %233 = vmatprep.subr.mxu0 0.0
    %234 = vmatpush1.msra.mxu0 0.0
    %235 = vmatprep.subr.mxu0 0.0
    %236 = vmatpush1.msra.mxu0 0.0
    %237 = vmatprep.subr.mxu0 0.0
    %238 = vmatpush1.msra.mxu0 0.0
    %239 = vmatprep.mubr.f32.mxu0 0.0
    %240 = vmatmul.mubr.f32.gmra.mrb[0].mxu0 %v173
    %v241 = vpop.f32.mrb[0].mxu0
    %v242 = vadd.f32 %v169, %v241
    %v243 = vpop.f32.mrb[0].mxu0
    %244 = vdwg.mxu0
    %v245 = vld [vmem:[%s6] sm:$0xff]
    %v246 = vld [vmem:[%s6 + $0x8] sm:$0xff]
    %v247 = vld [vmem:[%s6 + $0x10] sm:$0xff]
    %v248 = vld [vmem:[%s6 + $0x18] sm:$0xff]
    %v249 = vld [vmem:[#allocation7] sm:$0x1]
    %v251 = vlaneseq
    %v252 = vshrl.u32 %v251, 7
    %v253 = vsub.s32 0, %v252
    %v254 = vrot.slane %v249, %v253
    %v257 = vsel %vm171, %v72, 0
    %259 = vmatprep.subr.mxu0 0.0
    %260 = vmatpush1.msra.mxu0 %v245
    %261 = vmatprep.subr.mxu0 0.0
    %262 = vmatpush1.msra.mxu0 %v246
    %263 = vmatprep.subr.mxu0 0.0
    %264 = vmatpush1.msra.mxu0 %v247
    %265 = vmatprep.subr.mxu0 0.0
    %266 = vmatpush1.msra.mxu0 %v248
    %267 = vmatprep.subr.mxu0 0.0
    %268 = vmatpush1.msra.mxu0 0.0
    %269 = vmatprep.subr.mxu0 0.0
    %270 = vmatpush1.msra.mxu0 0.0
    %271 = vmatprep.subr.mxu0 0.0
    %272 = vmatpush1.msra.mxu0 0.0
    %273 = vmatprep.subr.mxu0 0.0
    %274 = vmatpush1.msra.mxu0 0.0
    %275 = vmatprep.subr.mxu0 0.0
    %276 = vmatpush1.msra.mxu0 0.0
    %277 = vmatprep.subr.mxu0 0.0
    %278 = vmatpush1.msra.mxu0 0.0
    %279 = vmatprep.subr.mxu0 0.0
    %280 = vmatpush1.msra.mxu0 0.0
    %281 = vmatprep.subr.mxu0 0.0
    %282 = vmatpush1.msra.mxu0 0.0
    %283 = vmatprep.subr.mxu0 0.0
    %284 = vmatpush1.msra.mxu0 0.0
    %285 = vmatprep.subr.mxu0 0.0
    %286 = vmatpush1.msra.mxu0 0.0
    %287 = vmatprep.subr.mxu0 0.0
    %288 = vmatpush1.msra.mxu0 0.0
    %289 = vmatprep.subr.mxu0 0.0
    %290 = vmatpush1.msra.mxu0 0.0
    %291 = vmatprep.subr.mxu0 0.0
    %292 = vmatpush1.msra.mxu0 0.0
    %293 = vmatprep.subr.mxu0 0.0
    %294 = vmatpush1.msra.mxu0 0.0
    %295 = vmatprep.subr.mxu0 0.0
    %296 = vmatpush1.msra.mxu0 0.0
    %297 = vmatprep.subr.mxu0 0.0
    %298 = vmatpush1.msra.mxu0 0.0
    %299 = vmatprep.subr.mxu0 0.0
    %300 = vmatpush1.msra.mxu0 0.0
    %301 = vmatprep.subr.mxu0 0.0
    %302 = vmatpush1.msra.mxu0 0.0
    %303 = vmatprep.subr.mxu0 0.0
    %304 = vmatpush1.msra.mxu0 0.0
    %305 = vmatprep.subr.mxu0 0.0
    %306 = vmatpush1.msra.mxu0 0.0
    %307 = vmatprep.subr.mxu0 0.0
    %308 = vmatpush1.msra.mxu0 0.0
    %309 = vmatprep.subr.mxu0 0.0
    %310 = vmatpush1.msra.mxu0 0.0
    %311 = vmatprep.subr.mxu0 0.0
    %312 = vmatpush1.msra.mxu0 0.0
    %313 = vmatprep.subr.mxu0 0.0
    %314 = vmatpush1.msra.mxu0 0.0
    %315 = vmatprep.subr.mxu0 0.0
    %316 = vmatpush1.msra.mxu0 0.0
    %317 = vmatprep.subr.mxu0 0.0
    %318 = vmatpush1.msra.mxu0 0.0
    %319 = vmatprep.subr.mxu0 0.0
    %320 = vmatpush1.msra.mxu0 0.0
    %321 = vmatprep.subr.mxu0 0.0
    %322 = vmatpush1.msra.mxu0 0.0
    %323 = vmatprep.mubr.f32.mxu0 0.0
    %324 = vmatmul.mubr.f32.gmra.mrb[0].mxu0 %v257
    %v325 = vpop.f32.mrb[0].mxu0
    %v326 = vadd.f32 %v254, %v325
    %v327 = vpop.f32.mrb[0].mxu0
    %328 = vdwg.mxu0
    %v329 = vadd.f32 %v242, %v326
    %v330 = vxor.u32 %v329, 2147483648
    %v331 = vmul.f32 %v330, 1.442695
    %v332 = vpow.pop %v331
    %v333 = vadd.f32 %v332, 1.0
    %v334 = vrcp.pop %v333
    %v335 = vmul.f32 1.0, %v334
    %337 = vrot.lane.b32.xlu0 %v326, 64
    %v338 = vpop.permute.xlu0 %337
    %v340 = vmul.f32 %v335, %v338
    %342 = vrot.lane.b32.xlu0 %v340, 64
    %v343 = vpop.permute.xlu0 %342
    %v345 = vadd.f32 %v242, %v343
    %v346 = vtanh.pop %v345
    %v347 = vsub.f32 1.0, %v335
    %349 = vrot.lane.b32.xlu0 %v346, 96
    %v350 = vpop.permute.xlu0 %349
    %v352 = vmul.f32 %v347, %v350
    %353 = vrot.lane.b32.xlu0 %v72, 32
    %v354 = vpop.permute.xlu0 %353
    %v356 = vmul.f32 %v335, %v354
    %v357 = vadd.f32 %v352, %v356
    %v358 = vld [vmem:[%s8] sm:$0xff]
    %v359 = vld [vmem:[%s8 + $0x8] sm:$0xff]
    %v360 = vld [vmem:[%s8 + $0x10] sm:$0xff]
    %v361 = vld [vmem:[%s8 + $0x18] sm:$0xff]
    %v362 = vld [vmem:[%s9] sm:$0x1]
    %v364 = vlaneseq
    %v365 = vshrl.u32 %v364, 7
    %v366 = vsub.s32 0, %v365
    %v367 = vrot.slane %v362, %v366
    %370 = vrot.lane.b32.xlu0 %v357, 96
    %v371 = vpop.permute.xlu0 %370
    %v372 = vsel %vm171, %v371, 0
    %374 = vmatprep.subr.mxu0 0.0
    %375 = vmatpush1.msra.mxu0 %v358
    %376 = vmatprep.subr.mxu0 0.0
    %377 = vmatpush1.msra.mxu0 %v359
    %378 = vmatprep.subr.mxu0 0.0
    %379 = vmatpush1.msra.mxu0 %v360
    %380 = vmatprep.subr.mxu0 0.0
    %381 = vmatpush1.msra.mxu0 %v361
    %382 = vmatprep.subr.mxu0 0.0
    %383 = vmatpush1.msra.mxu0 0.0
    %384 = vmatprep.subr.mxu0 0.0
    %385 = vmatpush1.msra.mxu0 0.0
    %386 = vmatprep.subr.mxu0 0.0
    %387 = vmatpush1.msra.mxu0 0.0
    %388 = vmatprep.subr.mxu0 0.0
    %389 = vmatpush1.msra.mxu0 0.0
    %390 = vmatprep.subr.mxu0 0.0
    %391 = vmatpush1.msra.mxu0 0.0
    %392 = vmatprep.subr.mxu0 0.0
    %393 = vmatpush1.msra.mxu0 0.0
    %394 = vmatprep.subr.mxu0 0.0
    %395 = vmatpush1.msra.mxu0 0.0
    %396 = vmatprep.subr.mxu0 0.0
    %397 = vmatpush1.msra.mxu0 0.0
    %398 = vmatprep.subr.mxu0 0.0
    %399 = vmatpush1.msra.mxu0 0.0
    %400 = vmatprep.subr.mxu0 0.0
    %401 = vmatpush1.msra.mxu0 0.0
    %402 = vmatprep.subr.mxu0 0.0
    %403 = vmatpush1.msra.mxu0 0.0
    %404 = vmatprep.subr.mxu0 0.0
    %405 = vmatpush1.msra.mxu0 0.0
    %406 = vmatprep.subr.mxu0 0.0
    %407 = vmatpush1.msra.mxu0 0.0
    %408 = vmatprep.subr.mxu0 0.0
    %409 = vmatpush1.msra.mxu0 0.0
    %410 = vmatprep.subr.mxu0 0.0
    %411 = vmatpush1.msra.mxu0 0.0
    %412 = vmatprep.subr.mxu0 0.0
    %413 = vmatpush1.msra.mxu0 0.0
    %414 = vmatprep.subr.mxu0 0.0
    %415 = vmatpush1.msra.mxu0 0.0
    %416 = vmatprep.subr.mxu0 0.0
    %417 = vmatpush1.msra.mxu0 0.0
    %418 = vmatprep.subr.mxu0 0.0
    %419 = vmatpush1.msra.mxu0 0.0
    %420 = vmatprep.subr.mxu0 0.0
    %421 = vmatpush1.msra.mxu0 0.0
    %422 = vmatprep.subr.mxu0 0.0
    %423 = vmatpush1.msra.mxu0 0.0
    %424 = vmatprep.subr.mxu0 0.0
    %425 = vmatpush1.msra.mxu0 0.0
    %426 = vmatprep.subr.mxu0 0.0
    %427 = vmatpush1.msra.mxu0 0.0
    %428 = vmatprep.subr.mxu0 0.0
    %429 = vmatpush1.msra.mxu0 0.0
    %430 = vmatprep.subr.mxu0 0.0
    %431 = vmatpush1.msra.mxu0 0.0
    %432 = vmatprep.subr.mxu0 0.0
    %433 = vmatpush1.msra.mxu0 0.0
    %434 = vmatprep.subr.mxu0 0.0
    %435 = vmatpush1.msra.mxu0 0.0
    %436 = vmatprep.subr.mxu0 0.0
    %437 = vmatpush1.msra.mxu0 0.0
    %438 = vmatprep.mubr.f32.mxu0 0.0
    %439 = vmatmul.mubr.f32.gmra.mrb[0].mxu0 %v372
    %v440 = vpop.f32.mrb[0].mxu0
    %v441 = vadd.f32 %v367, %v440
    %v442 = vpop.f32.mrb[0].mxu0
    %443 = vdwg.mxu0
    %444 = vst [vmem:[#allocation8] sm:$0xff] %v441
    // Predicated region
    $region54: #{tpu_custom_call.1} parent=1 // pred_check
      _
    $region55: #{tpu_custom_call.1} parent=1 // pred_check_branch
      %446 = sbr.rel (0) target = $region57
    $region56: #{tpu_custom_call.1} parent=1 // pred_region
      %s448 = ssub.s32 128, 128
      %449 = vsyncadd [#allocation4], %s448
      %s451 = sshll.u32 [#allocation8], 4
      %s452 = int_to_ptr.vmem [resolvable:$true] %s451
      %454 = dma.vmem_to_hbm [thread:$0]  %s452, 128, %s10, [#allocation4]
    $region57: #{tpu_custom_call.1} parent=1 // pred_fallthru
      _
    // Predicated region
    $region58: #{tpu_custom_call.1} parent=1 // pred_check
      _
    $region59: #{tpu_custom_call.1} parent=1 // pred_check_branch
      %456 = sbr.rel (0) target = $region61
    $region60: #{tpu_custom_call.1} parent=1 // pred_region
      %457 = dma.done [#allocation4], 128
    $region61: #{tpu_custom_call.1} parent=1 // pred_fallthru
      _
    %458 = vsyncpa [#allocation3], 1
    %459 = vsyncpa [#allocation6], 1
    %460 = vsyncpa [#allocation4], 1

</llo_original>
